<compile_context>
chip_gen: v6e
topology: v6e:2x2x1
jax: 0.10.0
libtpu: 0.0.40
codegen_flags: <defaults>
</compile_context>

<pallas_src>
import functools

import jax
import jax.numpy as jnp
from jax import lax
from jax.experimental import pallas as pl
from jax.experimental.pallas import tpu as pltpu

EPSILON = 1e-10
_VPU_DIST_MAX_D = 3      # use the MXU/norm distance path for D >= 4
_MAX_TILE = 1024         # cap so f32 (tn,tm) temporaries fit v7x's 64 MiB VMEM
_LANE = 128


def _round_up(x, m):
    return ((x + m - 1) // m) * m


def _cdiv(a, b):
    return -(-a // b)


# ----------------------------------------------------------------------------
# phi (RBF kernel) — matches get_phi() semantics; argument is SQUARED distance.
# Specialized to avoid jnp.power (exp+log on the EUP) in the hot path.
# ----------------------------------------------------------------------------
def _int_pow(x, p):
    """x**p for a small static integer p >= 1 via a multiply chain (VPU)."""
    acc = x
    for _ in range(p - 1):
        acc = acc * x
    return acc


def _phi(r, order):
    if order == 1:
        return jnp.sqrt(jnp.maximum(r, EPSILON))
    if order == 2:
        return 0.5 * r * jnp.log(jnp.maximum(r, EPSILON))
    if order == 4:
        return 0.5 * (r * r) * jnp.log(jnp.maximum(r, EPSILON))
    rc = jnp.maximum(r, EPSILON)
    if order % 2 == 0:
        return 0.5 * _int_pow(rc, order // 2) * jnp.log(rc)
    # Odd order: r^(order/2) = sqrt(r) * r^((order-1)/2)  (1 EUP op + VPU muls).
    return jnp.sqrt(rc) * _int_pow(rc, (order - 1) // 2)


# ----------------------------------------------------------------------------
# "build": solve for interpolation coefficients w, v (plain JAX glue, not the
# forward-pass hot path — there is no Pallas dense-solve primitive).
# ----------------------------------------------------------------------------
def build_coefficients(c, f, order=3, smoothing=0.0):
    b, n, d = c.shape
    k = f.shape[-1]
    cc = jnp.einsum("bnd,bmd->bnm", c, c)
    c_sq = jnp.sum(c * c, axis=-1)                    # [b, n]
    pair = c_sq[:, :, None] - 2.0 * cc + c_sq[:, None, :]
    amat = _phi(pair, order)                          # [b, n, n]
    if smoothing > 0.0:
        amat = amat + smoothing * jnp.eye(n, dtype=c.dtype)[None]
    ones = jnp.ones((b, n, 1), dtype=c.dtype)
    bmat = jnp.concatenate([c, ones], axis=2)         # [b, n, d+1]
    ncols = d + 1
    lhs_zeros = jnp.zeros((b, ncols, ncols), dtype=c.dtype)
    block_right = jnp.concatenate([bmat, lhs_zeros], axis=1)
    block_left = jnp.concatenate([amat, jnp.transpose(bmat, (0, 2, 1))], axis=1)
    lhs = jnp.concatenate([block_left, block_right], axis=2)
    rhs = jnp.concatenate([f, jnp.zeros((b, d + 1, k), dtype=c.dtype)], axis=1)
    w_v = jnp.linalg.solve(lhs, rhs)                  # [b, n+d+1, k]
    return w_v[:, :n, :], w_v[:, n:, :]


# ----------------------------------------------------------------------------
# Tile / VMEM budgeting helpers (generation-aware).
# ----------------------------------------------------------------------------
def _vmem_limit_bytes():
    """~3/4 of physical VMEM: v5e/v6e (128 MiB) -> 96 MiB, v7x (64 MiB) -> 48 MiB.
    Falls back to the v7x-safe 48 MiB if the query is unavailable."""
    try:
        cap = getattr(pltpu.get_tpu_info(), "vmem_capacity_bytes", None)
        if cap:
            return int(min((cap * 3) // 4, 100 * 1024 * 1024))
    except Exception:
        pass
    return 48 * 1024 * 1024


def _pick_tile(dim, max_tile=_MAX_TILE):
    """Large lane-aligned tile; pads at most ~25% past the 128-aligned extent."""
    base = _round_up(max(dim, 1), _LANE)      # full (lane-padded) extent
    if base <= max_tile:
        return base                           # single tile, minimal padding
    t = max_tile
    while t > _LANE and _round_up(dim, t) * 4 > base * 5:
        t //= 2
    return t


def _adjust_tm_for_cores(tm, b, m):
    """Ensure b * (#M-tiles) >= 2 so both v7x TensorCores get parallel work."""
    while tm > _LANE and b * _cdiv(m, tm) < 2:
        tm //= 2
    return tm


# ----------------------------------------------------------------------------
# Pallas kernel.  Grid = (B, M//tm, N//tn); N-tiles innermost (reduction).
# All tiles are in "transposed" layout so the M tile is the lane axis.
# ----------------------------------------------------------------------------
def _interp_kernel(xT_ref, c_ref, wT_ref, vTlin_ref, vTbias_ref, xsq_ref,
                   csq_ref, o_ref, acc_ref, *, order, d_dim, vpu_dist,
                   mxu_bf16):
    ni = pl.program_id(2)

    @pl.when(ni == 0)
    def _():
        acc_ref[...] = jnp.zeros_like(acc_ref)

    xT = xT_ref[0].astype(jnp.float32)       # (D, tm)  queries, transposed
    cb = c_ref[0].astype(jnp.float32)        # (tn, D)  centers
    wT = wT_ref[0].astype(jnp.float32)       # (K, tn)  RBF weights, transposed

    mx_dtype = jnp.bfloat16 if mxu_bf16 else jnp.float32

    if vpu_dist:
        # d2[n, m] = sum_d (c[n, d] - x[m, d])^2  -> (tn, tm), pure VPU
        # (only for very small D; sub/mul/add left to the compiler to fuse).
        d2 = None
        for dd in range(d_dim):
            diff = cb[:, dd:dd + 1] - xT[dd:dd + 1, :]          # (tn, tm)
            d2 = diff * diff if d2 is None else d2 + diff * diff
    else:
        # Norm formulation: cross term on the (otherwise idle) MXU.
        xc = jnp.dot(cb.astype(mx_dtype), xT.astype(mx_dtype),
                     preferred_element_type=jnp.float32)        # (tn, tm)
        d2 = (csq_ref[0].astype(jnp.float32) - 2.0 * xc
              + xsq_ref[0].astype(jnp.float32))

    phi = _phi(d2, order)                                        # (tn, tm)

    # Transposed RBF accumulation: (K, tn) @ (tn, tm) -> (K, tm), f32 acc.
    # NOTE: if the caller can fuse several problems' output channels, folding
    # them into K (up to ~128/256) is nearly free — the phi latch dominates.
    acc_ref[...] += jnp.dot(wT.astype(mx_dtype), phi.astype(mx_dtype),
                            preferred_element_type=jnp.float32)

    @pl.when(ni == pl.num_programs(2) - 1)
    def _():
        vlin = vTlin_ref[0].astype(jnp.float32)                  # (K, D)
        vbias = vTbias_ref[0].astype(jnp.float32)                # (K, 1)
        if vpu_dist:
            lin = vbias
            for dd in range(d_dim):
                lin = lin + vlin[:, dd:dd + 1] * xT[dd:dd + 1, :]
        else:
            lin = jnp.dot(vlin, xT, preferred_element_type=jnp.float32) + vbias
        o_ref[0] = (acc_ref[...] + lin).astype(o_ref.dtype)


# ----------------------------------------------------------------------------
# Wrapper: coefficient-side layout plumbing is hoisted (computed once).
# ----------------------------------------------------------------------------
def prepare_coefficients(c, w, v, order=3, tn=None):
    b, n, d = c.shape
    k = w.shape[-1]
    vpu_dist = d <= _VPU_DIST_MAX_D
    d_pad = d if vpu_dist else _round_up(d, 8)      # zero cols: no-op for d2

    tn = _pick_tile(n) if tn is None else tn
    n_pad = _round_up(n, tn)

    c_p = jnp.pad(c, ((0, 0), (0, n_pad - n), (0, d_pad - d)))   # (B, Np, Dp)
    w_p = jnp.pad(w, ((0, 0), (0, n_pad - n), (0, 0)))           # zero weights
    w_t = jnp.transpose(w_p, (0, 2, 1))                          # (B, K, Np)
    v_t = jnp.transpose(v, (0, 2, 1))                            # (B, K, D+1)
    v_lin = jnp.pad(v_t[:, :, :d], ((0, 0), (0, 0), (0, d_pad - d)))
    v_bias = v_t[:, :, d:]                                       # (B, K, 1)
    c_sq = jnp.sum(c_p * c_p, axis=-1, keepdims=True)            # (B, Np, 1)

    return dict(order=order, d=d, d_pad=d_pad, k=k, n=n, n_pad=n_pad, tn=tn,
                vpu_dist=vpu_dist, c=c_p, w_t=w_t, v_lin=v_lin,
                v_bias=v_bias, c_sq=c_sq)


def polyharm_forward_prepared(x, coeffs, tm=None, mxu_bf16=False):
    b, m, d = x.shape
    assert d == coeffs["d"], "query dimensionality must match the centers"
    d_pad = coeffs["d_pad"]
    tn = coeffs["tn"]
    n_pad = coeffs["n_pad"]
    k = coeffs["k"]
    order = coeffs["order"]
    vpu_dist = coeffs["vpu_dist"]

    tm = _pick_tile(m) if tm is None else tm
    tm = _adjust_tm_for_cores(tm, b, m)
    m_pad = _round_up(m, tm)

    # Query-side layout plumbing (per call): pad, transpose, squared norms.
    x_p = jnp.pad(x, ((0, 0), (0, m_pad - m), (0, d_pad - d)))
    x_t = jnp.transpose(x_p, (0, 2, 1))                          # (B, Dp, Mp)
    x_sq = jnp.sum(x_p * x_p, axis=-1)[:, None, :]               # (B, 1, Mp)

    kernel = functools.partial(
        _interp_kernel, order=order,
        d_dim=d if vpu_dist else d_pad,
        vpu_dist=vpu_dist, mxu_bf16=mxu_bf16)

    out_t = pl.pallas_call(
        kernel,
        out_shape=jax.ShapeDtypeStruct((b, k, m_pad), x.dtype),
        grid=(b, m_pad // tm, n_pad // tn),
        in_specs=[
            pl.BlockSpec((1, d_pad, tm), lambda bi, mi, ni: (bi, 0, mi)),  # x^T
            pl.BlockSpec((1, tn, d_pad), lambda bi, mi, ni: (bi, ni, 0)),  # c
            pl.BlockSpec((1, k, tn), lambda bi, mi, ni: (bi, 0, ni)),      # w^T
            pl.BlockSpec((1, k, d_pad), lambda bi, mi, ni: (bi, 0, 0)),    # v_lin^T
            pl.BlockSpec((1, k, 1), lambda bi, mi, ni: (bi, 0, 0)),        # v_bias^T
            pl.BlockSpec((1, 1, tm), lambda bi, mi, ni: (bi, 0, mi)),      # |x|^2
            pl.BlockSpec((1, tn, 1), lambda bi, mi, ni: (bi, ni, 0)),      # |c|^2
        ],
        out_specs=pl.BlockSpec((1, k, tm), lambda bi, mi, ni: (bi, 0, mi)),
        scratch_shapes=[pltpu.VMEM((k, tm), jnp.float32)],
        compiler_params=pltpu.CompilerParams(
            dimension_semantics=("parallel", "parallel", "arbitrary"),
            vmem_limit_bytes=_vmem_limit_bytes()),
    )(x_t, coeffs["c"], coeffs["w_t"], coeffs["v_lin"], coeffs["v_bias"],
      x_sq, coeffs["c_sq"])

    return jnp.transpose(out_t, (0, 2, 1))[:, :m, :]             # (B, M, K)


def polyharm_forward(x, c, w, v, order=3, tm=None, tn=None, mxu_bf16=False):
    coeffs = prepare_coefficients(c, w, v, order=order, tn=tn)
    return polyharm_forward_prepared(x, coeffs, tm=tm, mxu_bf16=mxu_bf16)


class PolyHarmInterpolator:
    """Functional JAX/Pallas equivalent of the PyTorch module: build() once
    (linear solve + coefficient layout plumbing hoisted), then call on x."""

    def __init__(self, c, f, order=3, smoothing=0.0, tn=None, mxu_bf16=False):
        self.order = int(order)
        self.mxu_bf16 = mxu_bf16
        self.w, self.v = build_coefficients(c, f, order=self.order,
                                            smoothing=smoothing)
        self._coeffs = prepare_coefficients(c, self.w, self.v,
                                            order=self.order, tn=tn)

    def __call__(self, x):
        return polyharm_forward_prepared(x, self._coeffs,
                                         mxu_bf16=self.mxu_bf16)


# ----------------------------------------------------------------------------
# Pure-JAX reference (mirrors the PyTorch forward; f32 dots).
# ----------------------------------------------------------------------------
def polyharm_forward_ref(x, c, w, v, order=3):
    hp = lax.Precision.HIGHEST
    x_sq = jnp.sum(x * x, axis=-1)
    c_sq = jnp.sum(c * c, axis=-1)
    xc = jnp.einsum("bmd,bnd->bmn", x, c, precision=hp)
    d2 = x_sq[:, :, None] - 2.0 * xc + c_sq[:, None, :]
    d_phi = _phi(d2, order)
    rbf = jnp.einsum("bmn,bnk->bmk", d_phi, w, precision=hp)
    ones = jnp.ones(x.shape[:2] + (1,), dtype=x.dtype)
    x_pad = jnp.concatenate([x, ones], axis=2)
    lin = jnp.einsum("bmd,bdk->bmk", x_pad, v, precision=hp)
    return rbf + lin


if __name__ == "__main__":
    key = jax.random.PRNGKey(0)
    (kc, kf, kx, k2c, k2w, k2v, k2x, k3c, k3w, k3v, k3x) = jax.random.split(key, 11)

    ORDER = 3
    K = 4

    # --- 1) End-to-end module semantics (build + forward), VPU path (D=3) ---
    B, N, D, M = 2, 16, 3, 32
    c = jax.random.normal(kc, (B, N, D), dtype=jnp.float32)
    f = jax.random.normal(kf, (B, N, K), dtype=jnp.float32)
    x = jax.random.normal(kx, (B, M, D), dtype=jnp.float32)

    interp = PolyHarmInterpolator(c, f, order=ORDER, smoothing=0.0)
    out = jax.block_until_ready(interp(x))
    ref = polyharm_forward_ref(x, c, interp.w, interp.v, order=ORDER)
    assert out.shape == (B, M, K)
    assert jnp.allclose(out, ref, atol=5e-3, rtol=5e-3), \
        "mismatch vs reference (small / VPU-distance case)"

    # --- 2) Larger tiles, MXU/norm distance path (D=8), multi-N-tile reduce --
    B2, N2, M2, D2 = 2, 512, 512, 8
    c2 = jax.random.normal(k2c, (B2, N2, D2), dtype=jnp.float32)
    w2 = 0.05 * jax.random.normal(k2w, (B2, N2, K), dtype=jnp.float32)
    v2 = 0.05 * jax.random.normal(k2v, (B2, D2 + 1, K), dtype=jnp.float32)
    x2 = jax.random.normal(k2x, (B2, M2, D2), dtype=jnp.float32)

    out2 = jax.block_until_ready(
        polyharm_forward(x2, c2, w2, v2, order=ORDER, tn=256))
    ref2 = polyharm_forward_ref(x2, c2, w2, v2, order=ORDER)
    assert out2.shape == (B2, M2, K)
    assert jnp.allclose(out2, ref2, atol=5e-3, rtol=5e-3), \
        "mismatch vs reference (large-tile / MXU-distance case)"

    # --- 3) Non-divisible shapes exercise the padding path (masked tiles) ----
    B3, N3, M3, D3 = 2, 150, 200, 5
    c3 = jax.random.normal(k3c, (B3, N3, D3), dtype=jnp.float32)
    w3 = 0.05 * jax.random.normal(k3w, (B3, N3, K), dtype=jnp.float32)
    v3 = 0.05 * jax.random.normal(k3v, (B3, D3 + 1, K), dtype=jnp.float32)
    x3 = jax.random.normal(k3x, (B3, M3, D3), dtype=jnp.float32)

    out3 = jax.block_until_ready(polyharm_forward(x3, c3, w3, v3, order=ORDER))
    ref3 = polyharm_forward_ref(x3, c3, w3, v3, order=ORDER)
    assert out3.shape == (B3, M3, K)
    assert jnp.allclose(out3, ref3, atol=5e-3, rtol=5e-3), \
        "mismatch vs reference (padded / non-divisible case)"

    # --- 4) Optional bf16-MXU-operand variant (perf option, f32 accumulate) --
    out2_bf16 = jax.block_until_ready(
        polyharm_forward(x2, c2, w2, v2, order=ORDER, tn=256, mxu_bf16=True))
    rel = float(jnp.max(jnp.abs(out2_bf16 - ref2)) /
                (jnp.max(jnp.abs(ref2)) + 1e-6))
    assert rel < 0.1, f"bf16-MXU variant drifted too far (rel={rel})"

    print("KERNEL_OK")
</pallas_src>

<mosaic_0001>
module attributes {stable_mosaic.version = 11 : i64} {
  func.func @_interp_kernel(%arg0: i32, %arg1: i32, %arg2: i32, %arg3: memref<1x3x128xf32, #tpu.memory_space<vmem>>, %arg4: memref<1x128x3xf32, #tpu.memory_space<vmem>>, %arg5: memref<1x4x128xf32, #tpu.memory_space<vmem>>, %arg6: memref<1x4x3xf32, #tpu.memory_space<vmem>>, %arg7: memref<1x4x1xf32, #tpu.memory_space<vmem>>, %arg8: memref<1x1x128xf32, #tpu.memory_space<vmem>>, %arg9: memref<1x128x1xf32, #tpu.memory_space<vmem>>, %arg10: memref<1x4x128xf32, #tpu.memory_space<vmem>>, %arg11: memref<4x128xf32, #tpu.memory_space<vmem>>) attributes {dimension_semantics = [#tpu.dimension_semantics<parallel>, #tpu.dimension_semantics<parallel>, #tpu.dimension_semantics<arbitrary>], iteration_bounds = array<i64: 2, 1, 1>, scalar_prefetch = 0 : i64, scratch_operands = 1 : i64, tpu.core_type = #tpu.core_type<tc>, window_params = [{transform_indices = @transform_0, window_bounds = array<i64: 1, 3, 128>}, {transform_indices = @transform_1, window_bounds = array<i64: 1, 128, 3>}, {transform_indices = @transform_2, window_bounds = array<i64: 1, 4, 128>}, {transform_indices = @transform_3, window_bounds = array<i64: 1, 4, 3>}, {transform_indices = @transform_4, window_bounds = array<i64: 1, 4, 1>}, {transform_indices = @transform_5, window_bounds = array<i64: 1, 1, 128>}, {transform_indices = @transform_6, window_bounds = array<i64: 1, 128, 1>}, {transform_indices = @transform_7, window_bounds = array<i64: 1, 4, 128>}]} {
    %c0_i32 = arith.constant 0 : i32
    %0 = arith.cmpi eq, %arg2, %c0_i32 : i32
    %1 = arith.extui %0 : i1 to i32
    %c0_i32_0 = arith.constant 0 : i32
    %2 = arith.cmpi ne, %1, %c0_i32_0 : i32
    scf.if %2 {
      %cst_16 = arith.constant 0.000000e+00 : f32
      %40 = vector.broadcast %cst_16 : f32 to vector<4x128xf32>
      %c0_17 = arith.constant 0 : index
      %c0_18 = arith.constant 0 : index
      %41 = vector.load %arg11[%c0_17, %c0_18] : memref<4x128xf32, #tpu.memory_space<vmem>>, vector<4x128xf32>
      tpu.vector_store %arg11[%c0_17, %c0_18], %40 {strides = array<i32>} : memref<4x128xf32, #tpu.memory_space<vmem>>, vector<4x128xf32>,
    } else {
    }
    %c0 = arith.constant 0 : index
    %c0_1 = arith.constant 0 : index
    %c0_2 = arith.constant 0 : index
    %3 = vector.load %arg3[%c0, %c0_1, %c0_2] : memref<1x3x128xf32, #tpu.memory_space<vmem>>, vector<1x3x128xf32>
    %4 = vector.shape_cast %3 : vector<1x3x128xf32> to vector<3x128xf32>
    %c0_3 = arith.constant 0 : index
    %c0_4 = arith.constant 0 : index
    %c0_5 = arith.constant 0 : index
    %5 = vector.load %arg4[%c0_3, %c0_4, %c0_5] : memref<1x128x3xf32, #tpu.memory_space<vmem>>, vector<1x128x3xf32>
    %6 = vector.shape_cast %5 : vector<1x128x3xf32> to vector<128x3xf32>
    %c0_6 = arith.constant 0 : index
    %c0_7 = arith.constant 0 : index
    %c0_8 = arith.constant 0 : index
    %7 = vector.load %arg5[%c0_6, %c0_7, %c0_8] : memref<1x4x128xf32, #tpu.memory_space<vmem>>, vector<1x4x128xf32>
    %8 = vector.shape_cast %7 : vector<1x4x128xf32> to vector<4x128xf32>
    %9 = vector.extract_strided_slice %6 {offsets = [0, 0], sizes = [128, 1], strides = [1, 1]} : vector<128x3xf32> to vector<128x1xf32>
    %10 = vector.extract_strided_slice %4 {offsets = [0, 0], sizes = [1, 128], strides = [1, 1]} : vector<3x128xf32> to vector<1x128xf32>
    %11 = vector.broadcast %9 : vector<128x1xf32> to vector<128x128xf32>
    %12 = vector.broadcast %10 : vector<1x128xf32> to vector<128x128xf32>
    %13 = arith.subf %11, %12 : vector<128x128xf32>
    %14 = arith.mulf %13, %13 : vector<128x128xf32>
    %15 = vector.extract_strided_slice %6 {offsets = [0, 1], sizes = [128, 1], strides = [1, 1]} : vector<128x3xf32> to vector<128x1xf32>
    %16 = vector.extract_strided_slice %4 {offsets = [1, 0], sizes = [1, 128], strides = [1, 1]} : vector<3x128xf32> to vector<1x128xf32>
    %17 = vector.broadcast %15 : vector<128x1xf32> to vector<128x128xf32>
    %18 = vector.broadcast %16 : vector<1x128xf32> to vector<128x128xf32>
    %19 = arith.subf %17, %18 : vector<128x128xf32>
    %20 = arith.mulf %19, %19 : vector<128x128xf32>
    %21 = arith.addf %14, %20 : vector<128x128xf32>
    %22 = vector.extract_strided_slice %6 {offsets = [0, 2], sizes = [128, 1], strides = [1, 1]} : vector<128x3xf32> to vector<128x1xf32>
    %23 = vector.extract_strided_slice %4 {offsets = [2, 0], sizes = [1, 128], strides = [1, 1]} : vector<3x128xf32> to vector<1x128xf32>
    %24 = vector.broadcast %22 : vector<128x1xf32> to vector<128x128xf32>
    %25 = vector.broadcast %23 : vector<1x128xf32> to vector<128x128xf32>
    %26 = arith.subf %24, %25 : vector<128x128xf32>
    %27 = arith.mulf %26, %26 : vector<128x128xf32>
    %28 = arith.addf %21, %27 : vector<128x128xf32>
    %cst = arith.constant 1.000000e-10 : f32
    %29 = vector.broadcast %cst : f32 to vector<128x128xf32>
    %30 = arith.maximumf %28, %29 : vector<128x128xf32>
    %31 = math.sqrt %30 : vector<128x128xf32>
    %32 = arith.mulf %31, %30 : vector<128x128xf32>
    %c0_9 = arith.constant 0 : index
    %c0_10 = arith.constant 0 : index
    %33 = vector.load %arg11[%c0_9, %c0_10] : memref<4x128xf32, #tpu.memory_space<vmem>>, vector<4x128xf32>
    %cst_11 = arith.constant dense<0.000000e+00> : vector<4x128xf32>
    %34 = tpu.matmul %8, %32, %cst_11 {dimension_numbers = #tpu.dot_dimension_numbers<[1], [0], [0], [1], [0, 0, 1, 1], [], []>} : vector<4x128xf32>, vector<128x128xf32>, vector<4x128xf32> -> vector<4x128xf32>
    %35 = arith.addf %33, %34 : vector<4x128xf32>
    %c0_12 = arith.constant 0 : index
    %c0_13 = arith.constant 0 : index
    %36 = vector.load %arg11[%c0_12, %c0_13] : memref<4x128xf32, #tpu.memory_space<vmem>>, vector<4x128xf32>
    tpu.vector_store %arg11[%c0_12, %c0_13], %35 {strides = array<i32>} : memref<4x128xf32, #tpu.memory_space<vmem>>, vector<4x128xf32>,
    %c0_i32_14 = arith.constant 0 : i32
    %37 = arith.cmpi eq, %arg2, %c0_i32_14 : i32
    %38 = arith.extui %37 : i1 to i32
    %c0_i32_15 = arith.constant 0 : i32
    %39 = arith.cmpi ne, %38, %c0_i32_15 : i32
    scf.if %39 {
      %c0_16 = arith.constant 0 : index
      %c0_17 = arith.constant 0 : index
      %c0_18 = arith.constant 0 : index
      %40 = vector.load %arg6[%c0_16, %c0_17, %c0_18] : memref<1x4x3xf32, #tpu.memory_space<vmem>>, vector<1x4x3xf32>
      %41 = vector.shape_cast %40 : vector<1x4x3xf32> to vector<4x3xf32>
      %c0_19 = arith.constant 0 : index
      %c0_20 = arith.constant 0 : index
      %c0_21 = arith.constant 0 : index
      %42 = vector.load %arg7[%c0_19, %c0_20, %c0_21] : memref<1x4x1xf32, #tpu.memory_space<vmem>>, vector<1x4x1xf32>
      %43 = vector.shape_cast %42 : vector<1x4x1xf32> to vector<4x1xf32>
      %44 = vector.extract_strided_slice %41 {offsets = [0, 0], sizes = [4, 1], strides = [1, 1]} : vector<4x3xf32> to vector<4x1xf32>
      %45 = vector.extract_strided_slice %4 {offsets = [0, 0], sizes = [1, 128], strides = [1, 1]} : vector<3x128xf32> to vector<1x128xf32>
      %46 = vector.broadcast %44 : vector<4x1xf32> to vector<4x128xf32>
      %47 = vector.broadcast %45 : vector<1x128xf32> to vector<4x128xf32>
      %48 = arith.mulf %46, %47 : vector<4x128xf32>
      %49 = vector.broadcast %43 : vector<4x1xf32> to vector<4x128xf32>
      %50 = arith.addf %49, %48 : vector<4x128xf32>
      %51 = vector.extract_strided_slice %41 {offsets = [0, 1], sizes = [4, 1], strides = [1, 1]} : vector<4x3xf32> to vector<4x1xf32>
      %52 = vector.extract_strided_slice %4 {offsets = [1, 0], sizes = [1, 128], strides = [1, 1]} : vector<3x128xf32> to vector<1x128xf32>
      %53 = vector.broadcast %51 : vector<4x1xf32> to vector<4x128xf32>
      %54 = vector.broadcast %52 : vector<1x128xf32> to vector<4x128xf32>
      %55 = arith.mulf %53, %54 : vector<4x128xf32>
      %56 = arith.addf %50, %55 : vector<4x128xf32>
      %57 = vector.extract_strided_slice %41 {offsets = [0, 2], sizes = [4, 1], strides = [1, 1]} : vector<4x3xf32> to vector<4x1xf32>
      %58 = vector.extract_strided_slice %4 {offsets = [2, 0], sizes = [1, 128], strides = [1, 1]} : vector<3x128xf32> to vector<1x128xf32>
      %59 = vector.broadcast %57 : vector<4x1xf32> to vector<4x128xf32>
      %60 = vector.broadcast %58 : vector<1x128xf32> to vector<4x128xf32>
      %61 = arith.mulf %59, %60 : vector<4x128xf32>
      %62 = arith.addf %56, %61 : vector<4x128xf32>
      %c0_22 = arith.constant 0 : index
      %c0_23 = arith.constant 0 : index
      %63 = vector.load %arg11[%c0_22, %c0_23] : memref<4x128xf32, #tpu.memory_space<vmem>>, vector<4x128xf32>
      %64 = arith.addf %63, %62 : vector<4x128xf32>
      %c0_24 = arith.constant 0 : index
      %c0_25 = arith.constant 0 : index
      %c0_26 = arith.constant 0 : index
      %65 = vector.load %arg10[%c0_24, %c0_25, %c0_26] : memref<1x4x128xf32, #tpu.memory_space<vmem>>, vector<1x4x128xf32>
      %66 = vector.shape_cast %65 : vector<1x4x128xf32> to vector<4x128xf32>
      %67 = vector.shape_cast %64 : vector<4x128xf32> to vector<1x4x128xf32>
      tpu.vector_store %arg10[%c0_24, %c0_25, %c0_26], %67 {strides = array<i32>} : memref<1x4x128xf32, #tpu.memory_space<vmem>>, vector<1x4x128xf32>,
    } else {
    }
    return
  }
  func.func @transform_0(%arg0: i32, %arg1: i32, %arg2: i32) -> (i32, i32, i32) {
    %c0_i32 = arith.constant 0 : i32
    %c0_i32_0 = arith.constant 0 : i32
    return %arg0, %c0_i32, %arg1 : i32, i32, i32
  }
  func.func @transform_1(%arg0: i32, %arg1: i32, %arg2: i32) -> (i32, i32, i32) {
    %c0_i32 = arith.constant 0 : i32
    %c0_i32_0 = arith.constant 0 : i32
    return %arg0, %arg2, %c0_i32 : i32, i32, i32
  }
  func.func @transform_2(%arg0: i32, %arg1: i32, %arg2: i32) -> (i32, i32, i32) {
    %c0_i32 = arith.constant 0 : i32
    %c0_i32_0 = arith.constant 0 : i32
    return %arg0, %c0_i32, %arg2 : i32, i32, i32
  }
  func.func @transform_3(%arg0: i32, %arg1: i32, %arg2: i32) -> (i32, i32, i32) {
    %c0_i32 = arith.constant 0 : i32
    %c0_i32_0 = arith.constant 0 : i32
    %c0_i32_1 = arith.constant 0 : i32
    return %arg0, %c0_i32, %c0_i32_0 : i32, i32, i32
  }
  func.func @transform_4(%arg0: i32, %arg1: i32, %arg2: i32) -> (i32, i32, i32) {
    %c0_i32 = arith.constant 0 : i32
    %c0_i32_0 = arith.constant 0 : i32
    %c0_i32_1 = arith.constant 0 : i32
    return %arg0, %c0_i32, %c0_i32_0 : i32, i32, i32
  }
  func.func @transform_5(%arg0: i32, %arg1: i32, %arg2: i32) -> (i32, i32, i32) {
    %c0_i32 = arith.constant 0 : i32
    %c0_i32_0 = arith.constant 0 : i32
    return %arg0, %c0_i32, %arg1 : i32, i32, i32
  }
  func.func @transform_6(%arg0: i32, %arg1: i32, %arg2: i32) -> (i32, i32, i32) {
    %c0_i32 = arith.constant 0 : i32
    %c0_i32_0 = arith.constant 0 : i32
    return %arg0, %arg2, %c0_i32 : i32, i32, i32
  }
  func.func @transform_7(%arg0: i32, %arg1: i32, %arg2: i32) -> (i32, i32, i32) {
    %c0_i32 = arith.constant 0 : i32
    %c0_i32_0 = arith.constant 0 : i32
    return %arg0, %c0_i32, %arg1 : i32, i32, i32
  }
}

</mosaic_0001>

<llo_original>
// kernel: tpu_custom_call.1
$region0: #{tpu_custom_call.1}
  #allocation0 [shape = 'u32[]', space=smem, size = 0x4, offset = 0x4, fixed_abs, tag = 'smem constant byte address 0x4 - core index']
  #allocation1 [shape = 'u32[144,128]{1,0:T(1,128)}', space=vmem, size = 0x12000, scoped, tag = 'internal scratch']
  #allocation2 [shape = 'f32[4,128]{1,0:T(4,128)}', space=vmem, size = 0x800, scoped, tag = 'scratch operand']
  %s0 = inlined_call_operand.vmem [shape: f32[2,3,128], index: 0, kind: input, shape index: {}]
  %s1 = inlined_call_operand.vmem [shape: f32[2,128,3], index: 1, kind: input, shape index: {}]
  %s2 = inlined_call_operand.vmem [shape: f32[2,4,128], index: 2, kind: input, shape index: {}]
  %s3 = inlined_call_operand.vmem [shape: f32[2,4,3], index: 3, kind: input, shape index: {}]
  %s4 = inlined_call_operand.vmem [shape: f32[2,4,1], index: 4, kind: input, shape index: {}]
  %s5 = inlined_call_operand.vmem [shape: f32[2,1,128], index: 5, kind: input, shape index: {}]
  %s6 = inlined_call_operand.vmem [shape: f32[2,128,1], index: 6, kind: input, shape index: {}]
  %s7 = inlined_call_operand.hbm [shape: f32[2,4,128], index: 7, kind: output, shape index: {}]
  %s8 = sld [smem:[#allocation0]]
  $region69: #{tpu_custom_call.1} parent=0
    _
  %s10 = ssub.s32 1, %s8
  %s11 = scalar_select 0, %s10, %s8
  $region1: #{tpu_custom_call.1} parent=0
    #allocation3 [shape = 'u8[4096]{0}', space=vmem, size = 0x1000, scoped, tag = 'output window, operand 0']
    #allocation4 [shape = 's32[2]{0}', space=sflag, size = 0x8, scoped, tag = 'scoped memory for tpu_custom_call.1']
    %12 = vsyncpa [#allocation4], 0
    %s13 = scalar_lea.sflag [#allocation4], 1
    %14 = vsyncpa %s13, 0
    loop: start=0, step=1, limit=4
    $region2: #{tpu_custom_call.1} parent=1 // loop_pre_header
      _
    $region3: #{tpu_custom_call.1} parent=1 // loop_header
      %s16 = sphi 0, %s20
      %p17 = scmp.ge.s32.totalorder %s16, 4
      %s23 = sphi 0, %s42
      %s24 = sphi 0, %s38
      %s25 = sphi 0, %s34
      %s26 = sphi 0, %s23
      %s27 = sphi 0, %s24
      %s28 = sphi 0, %s25
      %s29 = sphi 0, %s26
      %s30 = sphi 0, %s27
      %s31 = sphi 0, %s28
      %s47 = sphi 0, %s49
      %s50 = sphi 0, %s47
      %s51 = sphi 0, %s50
      %s67 = sphi 0, %s51
      %s75 = sphi 0, %s77
      %s78 = sphi 0, %s75
      %s79 = sphi 0, %s78
      %s95 = sphi 0, %s79
      %s103 = sphi 0, %s105
      %s106 = sphi 0, %s103
      %s107 = sphi 0, %s106
      %s123 = sphi 0, %s107
      %s129 = sphi 0, %s131
      %s132 = sphi 0, %s129
      %s133 = sphi 0, %s132
      %s149 = sphi 0, %s133
      %s155 = sphi 0, %s157
      %s158 = sphi 0, %s155
      %s159 = sphi 0, %s158
      %s175 = sphi 0, %s159
      %s183 = sphi 0, %s185
      %s186 = sphi 0, %s183
      %s187 = sphi 0, %s186
      %s203 = sphi 0, %s187
      %s211 = sphi 0, %s213
      %s214 = sphi 0, %s211
      %s215 = sphi 0, %s214
      %s231 = sphi 0, %s215
      %s239 = sphi 0, %s241
      %s242 = sphi 0, %s239
      %s243 = sphi 0, %s242
      %s259 = sphi 0, %s243
    $region4: #{tpu_custom_call.1} parent=1 // loop_header_branch
      %19 = sbr.rel (%p17) target = $region8
    $region5: #{tpu_custom_call.1} parent=1 // loop_body
      %s21 = ssub.s32 %s16, 1
      %s22 = ssub.s32 %s16, 2
      %s32 = sadd.s32 1, %s25
      %p33 = scmp.ge.s32.totalorder %s32, 1
      %s34 = scalar_select %p33, 0, %s32
      %s35 = sadd.s32 1, %s24
      %s36 = scalar_select %p33, %s35, %s24
      %p37 = scmp.ge.s32.totalorder %s36, 1
      %s38 = scalar_select %p37, 0, %s36
      %s39 = sadd.s32 1, %s23
      %s40 = scalar_select %p37, %s39, %s23
      %p41 = scmp.ge.s32.totalorder %s40, 2
      %s42 = scalar_select %p41, 0, %s40
      %s43 = ssub.s32 %s23, %s42
      %s44 = ssub.s32 %s24, %s38
      %s45 = sor.u32 %s43, %s44
      %p46 = scmp.eq.s32.totalorder %s45, 0
      %s48 = sadd.s32 %s47, 1
      %s49 = scalar_select %p46, %s47, %s48
      %p52 = pneg %p46
      %p53 = scmp.eq.s32.totalorder %s16, 1
      %p54 = por %p52, %p53
      %p55 = scmp.ne.s32.totalorder %s47, %s50
      %p56 = scmp.eq.s32.totalorder %s16, 0
      %p57 = por %p55, %p56
      %p58 = scmp.ne.s32.totalorder %s47, %s50
      %p59 = scmp.eq.s32.totalorder %s21, 1
      %p60 = por %p58, %p59
      %p61 = scmp.ne.s32.totalorder %s50, %s51
      %p62 = scmp.eq.s32.totalorder %s21, 0
      %p63 = por %p61, %p62
      %p64 = scmp.ne.s32.totalorder %s50, %s51
      %p65 = scmp.eq.s32.totalorder %s22, 1
      %p66 = por %p64, %p65
      %p68 = scmp.ne.s32.totalorder %s51, %s67
      %p69 = scmp.eq.s32.totalorder %s22, 0
      %p70 = por %p68, %p69
      %s71 = ssub.s32 %s23, %s42
      %s72 = ssub.s32 %s25, %s34
      %s73 = sor.u32 %s71, %s72
      %p74 = scmp.eq.s32.totalorder %s73, 0
      %s76 = sadd.s32 %s75, 1
      %s77 = scalar_select %p74, %s75, %s76
      %p80 = pneg %p74
      %p81 = scmp.eq.s32.totalorder %s16, 1
      %p82 = por %p80, %p81
      %p83 = scmp.ne.s32.totalorder %s75, %s78
      %p84 = scmp.eq.s32.totalorder %s16, 0
      %p85 = por %p83, %p84
      %p86 = scmp.ne.s32.totalorder %s75, %s78
      %p87 = scmp.eq.s32.totalorder %s21, 1
      %p88 = por %p86, %p87
      %p89 = scmp.ne.s32.totalorder %s78, %s79
      %p90 = scmp.eq.s32.totalorder %s21, 0
      %p91 = por %p89, %p90
      %p92 = scmp.ne.s32.totalorder %s78, %s79
      %p93 = scmp.eq.s32.totalorder %s22, 1
      %p94 = por %p92, %p93
      %p96 = scmp.ne.s32.totalorder %s79, %s95
      %p97 = scmp.eq.s32.totalorder %s22, 0
      %p98 = por %p96, %p97
      %s99 = ssub.s32 %s23, %s42
      %s100 = ssub.s32 %s25, %s34
      %s101 = sor.u32 %s99, %s100
      %p102 = scmp.eq.s32.totalorder %s101, 0
      %s104 = sadd.s32 %s103, 1
      %s105 = scalar_select %p102, %s103, %s104
      %p108 = pneg %p102
      %p109 = scmp.eq.s32.totalorder %s16, 1
      %p110 = por %p108, %p109
      %p111 = scmp.ne.s32.totalorder %s103, %s106
      %p112 = scmp.eq.s32.totalorder %s16, 0
      %p113 = por %p111, %p112
      %p114 = scmp.ne.s32.totalorder %s103, %s106
      %p115 = scmp.eq.s32.totalorder %s21, 1
      %p116 = por %p114, %p115
      %p117 = scmp.ne.s32.totalorder %s106, %s107
      %p118 = scmp.eq.s32.totalorder %s21, 0
      %p119 = por %p117, %p118
      %p120 = scmp.ne.s32.totalorder %s106, %s107
      %p121 = scmp.eq.s32.totalorder %s22, 1
      %p122 = por %p120, %p121
      %p124 = scmp.ne.s32.totalorder %s107, %s123
      %p125 = scmp.eq.s32.totalorder %s22, 0
      %p126 = por %p124, %p125
      %s127 = ssub.s32 %s23, %s42
      %p128 = scmp.eq.s32.totalorder %s127, 0
      %s130 = sadd.s32 %s129, 1
      %s131 = scalar_select %p128, %s129, %s130
      %p134 = pneg %p128
      %p135 = scmp.eq.s32.totalorder %s16, 1
      %p136 = por %p134, %p135
      %p137 = scmp.ne.s32.totalorder %s129, %s132
      %p138 = scmp.eq.s32.totalorder %s16, 0
      %p139 = por %p137, %p138
      %p140 = scmp.ne.s32.totalorder %s129, %s132
      %p141 = scmp.eq.s32.totalorder %s21, 1
      %p142 = por %p140, %p141
      %p143 = scmp.ne.s32.totalorder %s132, %s133
      %p144 = scmp.eq.s32.totalorder %s21, 0
      %p145 = por %p143, %p144
      %p146 = scmp.ne.s32.totalorder %s132, %s133
      %p147 = scmp.eq.s32.totalorder %s22, 1
      %p148 = por %p146, %p147
      %p150 = scmp.ne.s32.totalorder %s133, %s149
      %p151 = scmp.eq.s32.totalorder %s22, 0
      %p152 = por %p150, %p151
      %s153 = ssub.s32 %s23, %s42
      %p154 = scmp.eq.s32.totalorder %s153, 0
      %s156 = sadd.s32 %s155, 1
      %s157 = scalar_select %p154, %s155, %s156
      %p160 = pneg %p154
      %p161 = scmp.eq.s32.totalorder %s16, 1
      %p162 = por %p160, %p161
      %p163 = scmp.ne.s32.totalorder %s155, %s158
      %p164 = scmp.eq.s32.totalorder %s16, 0
      %p165 = por %p163, %p164
      %p166 = scmp.ne.s32.totalorder %s155, %s158
      %p167 = scmp.eq.s32.totalorder %s21, 1
      %p168 = por %p166, %p167
      %p169 = scmp.ne.s32.totalorder %s158, %s159
      %p170 = scmp.eq.s32.totalorder %s21, 0
      %p171 = por %p169, %p170
      %p172 = scmp.ne.s32.totalorder %s158, %s159
      %p173 = scmp.eq.s32.totalorder %s22, 1
      %p174 = por %p172, %p173
      %p176 = scmp.ne.s32.totalorder %s159, %s175
      %p177 = scmp.eq.s32.totalorder %s22, 0
      %p178 = por %p176, %p177
      %s179 = ssub.s32 %s23, %s42
      %s180 = ssub.s32 %s24, %s38
      %s181 = sor.u32 %s179, %s180
      %p182 = scmp.eq.s32.totalorder %s181, 0
      %s184 = sadd.s32 %s183, 1
      %s185 = scalar_select %p182, %s183, %s184
      %p188 = pneg %p182
      %p189 = scmp.eq.s32.totalorder %s16, 1
      %p190 = por %p188, %p189
      %p191 = scmp.ne.s32.totalorder %s183, %s186
      %p192 = scmp.eq.s32.totalorder %s16, 0
      %p193 = por %p191, %p192
      %p194 = scmp.ne.s32.totalorder %s183, %s186
      %p195 = scmp.eq.s32.totalorder %s21, 1
      %p196 = por %p194, %p195
      %p197 = scmp.ne.s32.totalorder %s186, %s187
      %p198 = scmp.eq.s32.totalorder %s21, 0
      %p199 = por %p197, %p198
      %p200 = scmp.ne.s32.totalorder %s186, %s187
      %p201 = scmp.eq.s32.totalorder %s22, 1
      %p202 = por %p200, %p201
      %p204 = scmp.ne.s32.totalorder %s187, %s203
      %p205 = scmp.eq.s32.totalorder %s22, 0
      %p206 = por %p204, %p205
      %s207 = ssub.s32 %s23, %s42
      %s208 = ssub.s32 %s25, %s34
      %s209 = sor.u32 %s207, %s208
      %p210 = scmp.eq.s32.totalorder %s209, 0
      %s212 = sadd.s32 %s211, 1
      %s213 = scalar_select %p210, %s211, %s212
      %p216 = pneg %p210
      %p217 = scmp.eq.s32.totalorder %s16, 1
      %p218 = por %p216, %p217
      %p219 = scmp.ne.s32.totalorder %s211, %s214
      %p220 = scmp.eq.s32.totalorder %s16, 0
      %p221 = por %p219, %p220
      %p222 = scmp.ne.s32.totalorder %s211, %s214
      %p223 = scmp.eq.s32.totalorder %s21, 1
      %p224 = por %p222, %p223
      %p225 = scmp.ne.s32.totalorder %s214, %s215
      %p226 = scmp.eq.s32.totalorder %s21, 0
      %p227 = por %p225, %p226
      %p228 = scmp.ne.s32.totalorder %s214, %s215
      %p229 = scmp.eq.s32.totalorder %s22, 1
      %p230 = por %p228, %p229
      %p232 = scmp.ne.s32.totalorder %s215, %s231
      %p233 = scmp.eq.s32.totalorder %s22, 0
      %p234 = por %p232, %p233
      %s235 = ssub.s32 %s23, %s42
      %s236 = ssub.s32 %s24, %s38
      %s237 = sor.u32 %s235, %s236
      %p238 = scmp.eq.s32.totalorder %s237, 0
      %s240 = sadd.s32 %s239, 1
      %s241 = scalar_select %p238, %s239, %s240
      %p244 = pneg %p238
      %p245 = scmp.eq.s32.totalorder %s16, 1
      %p246 = por %p244, %p245
      %p247 = scmp.ne.s32.totalorder %s239, %s242
      %p248 = scmp.eq.s32.totalorder %s16, 0
      %p249 = por %p247, %p248
      %p250 = scmp.ne.s32.totalorder %s239, %s242
      %p251 = scmp.eq.s32.totalorder %s21, 1
      %p252 = por %p250, %p251
      %p253 = scmp.ne.s32.totalorder %s242, %s243
      %p254 = scmp.eq.s32.totalorder %s21, 0
      %p255 = por %p253, %p254
      %p256 = scmp.ne.s32.totalorder %s242, %s243
      %p257 = scmp.eq.s32.totalorder %s22, 1
      %p258 = por %p256, %p257
      %p260 = scmp.ne.s32.totalorder %s243, %s259
      %p261 = scmp.eq.s32.totalorder %s22, 0
      %p262 = por %p260, %p261
      %p263 = scmp.le.s32.totalorder 1, %s16
      %p264 = scmp.lt.s32.totalorder %s16, 3
      %p265 = pnand %p263, %p264
      %p266 = pneg %p265
      // Predicated region
      $region9: #{tpu_custom_call.1} parent=5 // pred_check
        _
      $region10: #{tpu_custom_call.1} parent=5 // pred_check_branch
        %268 = sbr.rel (%p265) target = $region12
      $region11: #{tpu_custom_call.1} parent=5 // pred_region
        %s269 = ssub.s32 %s16, 1
      $region12: #{tpu_custom_call.1} parent=5 // pred_fallthru
        _
      %p270 = scmp.lt.s32.totalorder %s16, 2
      // Predicated region
      $region13: #{tpu_custom_call.1} parent=5 // pred_check
        %p271 = pneg %p270
      $region14: #{tpu_custom_call.1} parent=5 // pred_check_branch
        %273 = sbr.rel (%p271) target = $region16
      $region15: #{tpu_custom_call.1} parent=5 // pred_region
        // Predicated region
        $region17: #{tpu_custom_call.1} parent=15 // pred_check
          %p274 = pneg %p57
        $region18: #{tpu_custom_call.1} parent=15 // pred_check_branch
          %276 = sbr.rel (%p274) target = $region20
        $region19: #{tpu_custom_call.1} parent=15 // pred_region
          %p277 = scmp.lt.s32.totalorder %s23, 1
          %s278 = scalar_select %p277, %s23, 1
          %p279 = scmp.lt.s32.totalorder %s24, 0
          %s280 = scalar_select %p279, %s24, 0
          %s281 = sadd.s32 %s280, %s278
          %s282 = smul.addr %s281, 4
          %s283 = scalar_lea.vmem %s0, %s282
        $region20: #{tpu_custom_call.1} parent=15 // pred_fallthru
          _
        // Predicated region
        $region21: #{tpu_custom_call.1} parent=15 // pred_check
          %p284 = pneg %p85
        $region22: #{tpu_custom_call.1} parent=15 // pred_check_branch
          %286 = sbr.rel (%p284) target = $region24
        $region23: #{tpu_custom_call.1} parent=15 // pred_region
          %s287 = smul.u32 16, %s25
          %p288 = scmp.lt.s32.totalorder %s23, 1
          %s289 = scalar_select %p288, %s23, 1
          %p290 = scmp.lt.s32.totalorder %s287, 15
          %s291 = scalar_select %p290, %s287, 15
          %s292 = smul.addr %s289, 16
          %s293 = sadd.s32 %s291, %s292
          %s294 = smul.addr %s293, 8
          %s295 = scalar_lea.vmem %s1, %s294
          %s296 = smul.u32 16, %s25
        $region24: #{tpu_custom_call.1} parent=15 // pred_fallthru
          _
        // Predicated region
        $region25: #{tpu_custom_call.1} parent=15 // pred_check
          %p297 = pneg %p113
        $region26: #{tpu_custom_call.1} parent=15 // pred_check_branch
          %299 = sbr.rel (%p297) target = $region28
        $region27: #{tpu_custom_call.1} parent=15 // pred_region
          %p300 = scmp.lt.s32.totalorder %s23, 1
          %s301 = scalar_select %p300, %s23, 1
          %p302 = scmp.lt.s32.totalorder %s25, 0
          %s303 = scalar_select %p302, %s25, 0
          %s304 = sadd.s32 %s303, %s301
          %s305 = smul.addr %s304, 4
          %s306 = scalar_lea.vmem %s2, %s305
        $region28: #{tpu_custom_call.1} parent=15 // pred_fallthru
          _
        // Predicated region
        $region29: #{tpu_custom_call.1} parent=15 // pred_check
          %p307 = pneg %p139
        $region30: #{tpu_custom_call.1} parent=15 // pred_check_branch
          %309 = sbr.rel (%p307) target = $region32
        $region31: #{tpu_custom_call.1} parent=15 // pred_region
          %p310 = scmp.lt.s32.totalorder %s23, 1
          %s311 = scalar_select %p310, %s23, 1
          %s312 = smul.addr %s311, 4
          %s313 = scalar_lea.vmem %s3, %s312
        $region32: #{tpu_custom_call.1} parent=15 // pred_fallthru
          _
        // Predicated region
        $region33: #{tpu_custom_call.1} parent=15 // pred_check
          %p314 = pneg %p165
        $region34: #{tpu_custom_call.1} parent=15 // pred_check_branch
          %316 = sbr.rel (%p314) target = $region36
        $region35: #{tpu_custom_call.1} parent=15 // pred_region
          %p317 = scmp.lt.s32.totalorder %s23, 1
          %s318 = scalar_select %p317, %s23, 1
          %s319 = smul.addr %s318, 4
          %s320 = scalar_lea.vmem %s4, %s319
        $region36: #{tpu_custom_call.1} parent=15 // pred_fallthru
          _
        // Predicated region
        $region37: #{tpu_custom_call.1} parent=15 // pred_check
          %p321 = pneg %p193
        $region38: #{tpu_custom_call.1} parent=15 // pred_check_branch
          %323 = sbr.rel (%p321) target = $region40
        $region39: #{tpu_custom_call.1} parent=15 // pred_region
          %p324 = scmp.lt.s32.totalorder %s23, 1
          %s325 = scalar_select %p324, %s23, 1
          %p326 = scmp.lt.s32.totalorder %s24, 0
          %s327 = scalar_select %p326, %s24, 0
          %s328 = sadd.s32 %s327, %s325
          %s329 = scalar_lea.vmem %s5, %s328
        $region40: #{tpu_custom_call.1} parent=15 // pred_fallthru
          _
        // Predicated region
        $region41: #{tpu_custom_call.1} parent=15 // pred_check
          %p330 = pneg %p221
        $region42: #{tpu_custom_call.1} parent=15 // pred_check_branch
          %332 = sbr.rel (%p330) target = $region44
        $region43: #{tpu_custom_call.1} parent=15 // pred_region
          %s333 = smul.u32 16, %s25
          %p334 = scmp.lt.s32.totalorder %s23, 1
          %s335 = scalar_select %p334, %s23, 1
          %p336 = scmp.lt.s32.totalorder %s333, 15
          %s337 = scalar_select %p336, %s333, 15
          %s338 = smul.addr %s335, 16
          %s339 = sadd.s32 %s337, %s338
          %s340 = smul.addr %s339, 8
          %s341 = scalar_lea.vmem %s6, %s340
          %s342 = smul.u32 16, %s25
        $region44: #{tpu_custom_call.1} parent=15 // pred_fallthru
          _
      $region16: #{tpu_custom_call.1} parent=5 // pred_fallthru
        _
      %p343 = scmp.le.s32.totalorder 1, %s16
      %p344 = scmp.lt.s32.totalorder %s16, 3
      %p345 = pnand %p343, %p344
      %p346 = pneg %p345
      // Predicated region
      $region45: #{tpu_custom_call.1} parent=5 // pred_check
        _
      $region46: #{tpu_custom_call.1} parent=5 // pred_check_branch
        %348 = sbr.rel (%p345) target = $region48
      $region47: #{tpu_custom_call.1} parent=5 // pred_region
        %s349 = ssub.s32 %s16, 1
        %p350 = scmp.lt.s32.totalorder %s26, 1
        %s351 = scalar_select %p350, %s26, 1
        %p352 = scmp.lt.s32.totalorder %s27, 0
        %s353 = scalar_select %p352, %s27, 0
        %s354 = sadd.s32 %s353, %s351
        %s355 = smul.addr %s354, 4
        %s356 = scalar_lea.vmem %s0, %s355
        %p357 = pneg %p63
        %p358 = pneg %p60
        %s359 = smul.u32 16, %s28
        %p360 = scmp.lt.s32.totalorder %s26, 1
        %s361 = scalar_select %p360, %s26, 1
        %p362 = scmp.lt.s32.totalorder %s359, 15
        %s363 = scalar_select %p362, %s359, 15
        %s364 = smul.addr %s361, 16
        %s365 = sadd.s32 %s363, %s364
        %s366 = smul.addr %s365, 8
        %s367 = scalar_lea.vmem %s1, %s366
        %p368 = pneg %p91
        %p369 = pneg %p88
        %p370 = scmp.lt.s32.totalorder %s26, 1
        %s371 = scalar_select %p370, %s26, 1
        %p372 = scmp.lt.s32.totalorder %s28, 0
        %s373 = scalar_select %p372, %s28, 0
        %s374 = sadd.s32 %s373, %s371
        %s375 = smul.addr %s374, 4
        %s376 = scalar_lea.vmem %s2, %s375
        %p377 = pneg %p119
        %p378 = pneg %p116
        %p379 = scmp.lt.s32.totalorder %s26, 1
        %s380 = scalar_select %p379, %s26, 1
        %s381 = smul.addr %s380, 4
        %s382 = scalar_lea.vmem %s3, %s381
        %p383 = pneg %p145
        %p384 = pneg %p142
        %p385 = scmp.lt.s32.totalorder %s26, 1
        %s386 = scalar_select %p385, %s26, 1
        %s387 = smul.addr %s386, 4
        %s388 = scalar_lea.vmem %s4, %s387
        %p389 = pneg %p171
        %p390 = pneg %p168
        %p391 = scmp.lt.s32.totalorder %s26, 1
        %s392 = scalar_select %p391, %s26, 1
        %p393 = scmp.lt.s32.totalorder %s27, 0
        %s394 = scalar_select %p393, %s27, 0
        %s395 = sadd.s32 %s394, %s392
        %s396 = scalar_lea.vmem %s5, %s395
        %p397 = pneg %p199
        %p398 = pneg %p196
        %s399 = smul.u32 16, %s28
        %p400 = scmp.lt.s32.totalorder %s26, 1
        %s401 = scalar_select %p400, %s26, 1
        %p402 = scmp.lt.s32.totalorder %s399, 15
        %s403 = scalar_select %p402, %s399, 15
        %s404 = smul.addr %s401, 16
        %s405 = sadd.s32 %s403, %s404
        %s406 = smul.addr %s405, 8
        %s407 = scalar_lea.vmem %s6, %s406
        %p408 = pneg %p227
        %p409 = pneg %p224
        %p410 = pneg %p255
        %p411 = pneg %p252
        %s412 = sand.u32 %s242, 1
        %s413 = scalar_lea.sflag [#allocation4], %s412
        %s414 = sand.u32 %s242, 1
        %s415 = smul.addr %s414, 4
        %s416 = scalar_lea.vmem [#allocation3], %s415
        %p417 = scmp.lt.s32.totalorder %s26, 1
        %s418 = scalar_select %p417, %s26, 1
        %p419 = scmp.lt.s32.totalorder %s27, 0
        %s420 = scalar_select %p419, %s27, 0
        %s421 = sadd.s32 %s420, %s418
        %s422 = smul.addr %s421, 4
        %s423 = scalar_lea.vmem %s0, %s422
        %s424 = smul.u32 16, %s28
        %p425 = scmp.lt.s32.totalorder %s26, 1
        %s426 = scalar_select %p425, %s26, 1
        %p427 = scmp.lt.s32.totalorder %s424, 15
        %s428 = scalar_select %p427, %s424, 15
        %s429 = smul.addr %s426, 16
        %s430 = sadd.s32 %s428, %s429
        %s431 = smul.addr %s430, 8
        %s432 = scalar_lea.vmem %s1, %s431
        %s433 = smul.u32 16, %s28
        %p434 = scmp.lt.s32.totalorder %s26, 1
        %s435 = scalar_select %p434, %s26, 1
        %p436 = scmp.lt.s32.totalorder %s28, 0
        %s437 = scalar_select %p436, %s28, 0
        %s438 = sadd.s32 %s437, %s435
        %s439 = smul.addr %s438, 4
        %s440 = scalar_lea.vmem %s2, %s439
        %p441 = scmp.lt.s32.totalorder %s26, 1
        %s442 = scalar_select %p441, %s26, 1
        %s443 = smul.addr %s442, 4
        %s444 = scalar_lea.vmem %s3, %s443
        %p445 = scmp.lt.s32.totalorder %s26, 1
        %s446 = scalar_select %p445, %s26, 1
        %s447 = smul.addr %s446, 4
        %s448 = scalar_lea.vmem %s4, %s447
        %p449 = scmp.lt.s32.totalorder %s26, 1
        %s450 = scalar_select %p449, %s26, 1
        %p451 = scmp.lt.s32.totalorder %s27, 0
        %s452 = scalar_select %p451, %s27, 0
        %s453 = sadd.s32 %s452, %s450
        %s454 = scalar_lea.vmem %s5, %s453
        %s455 = smul.u32 16, %s28
        %p456 = scmp.lt.s32.totalorder %s26, 1
        %s457 = scalar_select %p456, %s26, 1
        %p458 = scmp.lt.s32.totalorder %s455, 15
        %s459 = scalar_select %p458, %s455, 15
        %s460 = smul.addr %s457, 16
        %s461 = sadd.s32 %s459, %s460
        %s462 = smul.addr %s461, 8
        %s463 = scalar_lea.vmem %s6, %s462
        %s464 = smul.u32 16, %s28
        %p465 = scmp.eq.s32.totalorder %s28, 0
        // Predicated region
        $region49: #{tpu_custom_call.1} parent=47 // pred_check
          %p466 = pneg %p465
        $region50: #{tpu_custom_call.1} parent=47 // pred_check_branch
          %468 = sbr.rel (%p466) target = $region52
        $region51: #{tpu_custom_call.1} parent=47 // pred_region
          %469 = vst [vmem:[#allocation2] sm:$0xf] 0.0
        $region52: #{tpu_custom_call.1} parent=47 // pred_fallthru
          _
        %v470 = vld [vmem:[%s423] sm:$0x7]
        %v471 = vld [vmem:[%s432] sm:$0xff]
        %v472 = vld [vmem:[%s432 + $0x8] sm:$0xff]
        %v473 = vld [vmem:[%s432 + $0x10] sm:$0xff]
        %v474 = vld [vmem:[%s432 + $0x18] sm:$0xff]
        %v475 = vld [vmem:[%s432 + $0x20] sm:$0xff]
        %v476 = vld [vmem:[%s432 + $0x28] sm:$0xff]
        %v477 = vld [vmem:[%s432 + $0x30] sm:$0xff]
        %v478 = vld [vmem:[%s432 + $0x38] sm:$0xff]
        %v479 = vld [vmem:[%s432 + $0x40] sm:$0xff]
        %v480 = vld [vmem:[%s432 + $0x48] sm:$0xff]
        %v481 = vld [vmem:[%s432 + $0x50] sm:$0xff]
        %v482 = vld [vmem:[%s432 + $0x58] sm:$0xff]
        %v483 = vld [vmem:[%s432 + $0x60] sm:$0xff]
        %v484 = vld [vmem:[%s432 + $0x68] sm:$0xff]
        %v485 = vld [vmem:[%s432 + $0x70] sm:$0xff]
        %v486 = vld [vmem:[%s432 + $0x78] sm:$0xff]
        %v487 = vld [vmem:[%s440] sm:$0xf]
        %489 = vset.pattern.permute.xlu0 0
        %490 = vperm.xlu0 %489, %v471
        %v491 = vpop.permute.xlu0 %490
        %494 = vset.pattern.permute.xlu0 0
        %495 = vperm.xlu0 %494, %v472
        %v496 = vpop.permute.xlu0 %495
        %499 = vset.pattern.permute.xlu0 0
        %500 = vperm.xlu0 %499, %v473
        %v501 = vpop.permute.xlu0 %500
        %504 = vset.pattern.permute.xlu0 0
        %505 = vperm.xlu0 %504, %v474
        %v506 = vpop.permute.xlu0 %505
        %509 = vset.pattern.permute.xlu0 0
        %510 = vperm.xlu0 %509, %v475
        %v511 = vpop.permute.xlu0 %510
        %514 = vset.pattern.permute.xlu0 0
        %515 = vperm.xlu0 %514, %v476
        %v516 = vpop.permute.xlu0 %515
        %519 = vset.pattern.permute.xlu0 0
        %520 = vperm.xlu0 %519, %v477
        %v521 = vpop.permute.xlu0 %520
        %524 = vset.pattern.permute.xlu0 0
        %525 = vperm.xlu0 %524, %v478
        %v526 = vpop.permute.xlu0 %525
        %529 = vset.pattern.permute.xlu0 0
        %530 = vperm.xlu0 %529, %v479
        %v531 = vpop.permute.xlu0 %530
        %534 = vset.pattern.permute.xlu0 0
        %535 = vperm.xlu0 %534, %v480
        %v536 = vpop.permute.xlu0 %535
        %539 = vset.pattern.permute.xlu0 0
        %540 = vperm.xlu0 %539, %v481
        %v541 = vpop.permute.xlu0 %540
        %544 = vset.pattern.permute.xlu0 0
        %545 = vperm.xlu0 %544, %v482
        %v546 = vpop.permute.xlu0 %545
        %549 = vset.pattern.permute.xlu0 0
        %550 = vperm.xlu0 %549, %v483
        %v551 = vpop.permute.xlu0 %550
        %554 = vset.pattern.permute.xlu0 0
        %555 = vperm.xlu0 %554, %v484
        %v556 = vpop.permute.xlu0 %555
        %559 = vset.pattern.permute.xlu0 0
        %560 = vperm.xlu0 %559, %v485
        %v561 = vpop.permute.xlu0 %560
        %564 = vset.pattern.permute.xlu0 0
        %565 = vperm.xlu0 %564, %v486
        %v566 = vpop.permute.xlu0 %565
        %v568 = vlaneseq
        %v569 = vshrl.u32 %v568, 7
        %v570 = vsub.s32 0, %v569
        %v571 = vrot.slane %v470, %v570
        %v572 = vsub.f32 %v491, %v571
        %v573 = vsub.f32 %v496, %v571
        %v574 = vsub.f32 %v501, %v571
        %v575 = vsub.f32 %v506, %v571
        %v576 = vsub.f32 %v511, %v571
        %v577 = vsub.f32 %v516, %v571
        %v578 = vsub.f32 %v521, %v571
        %v579 = vsub.f32 %v526, %v571
        %v580 = vsub.f32 %v531, %v571
        %v581 = vsub.f32 %v536, %v571
        %v582 = vsub.f32 %v541, %v571
        %v583 = vsub.f32 %v546, %v571
        %v584 = vsub.f32 %v551, %v571
        %v585 = vsub.f32 %v556, %v571
        %v586 = vsub.f32 %v561, %v571
        %v587 = vsub.f32 %v566, %v571
        %v588 = vmul.f32 %v572, %v572
        %v589 = vmul.f32 %v573, %v573
        %v590 = vmul.f32 %v574, %v574
        %v591 = vmul.f32 %v575, %v575
        %v592 = vmul.f32 %v576, %v576
        %v593 = vmul.f32 %v577, %v577
        %v594 = vmul.f32 %v578, %v578
        %v595 = vmul.f32 %v579, %v579
        %v596 = vmul.f32 %v580, %v580
        %v597 = vmul.f32 %v581, %v581
        %v598 = vmul.f32 %v582, %v582
        %v599 = vmul.f32 %v583, %v583
        %v600 = vmul.f32 %v584, %v584
        %v601 = vmul.f32 %v585, %v585
        %v602 = vmul.f32 %v586, %v586
        %v603 = vmul.f32 %v587, %v587
        %604 = vset.pattern.permute.xlu0 1
        %605 = vperm.xlu0 %604, %v471
        %v606 = vpop.permute.xlu0 %605
        %608 = vset.pattern.permute.xlu0 1
        %609 = vperm.xlu0 %608, %v472
        %v610 = vpop.permute.xlu0 %609
        %612 = vset.pattern.permute.xlu0 1
        %613 = vperm.xlu0 %612, %v473
        %v614 = vpop.permute.xlu0 %613
        %616 = vset.pattern.permute.xlu0 1
        %617 = vperm.xlu0 %616, %v474
        %v618 = vpop.permute.xlu0 %617
        %620 = vset.pattern.permute.xlu0 1
        %621 = vperm.xlu0 %620, %v475
        %v622 = vpop.permute.xlu0 %621
        %624 = vset.pattern.permute.xlu0 1
        %625 = vperm.xlu0 %624, %v476
        %v626 = vpop.permute.xlu0 %625
        %628 = vset.pattern.permute.xlu0 1
        %629 = vperm.xlu0 %628, %v477
        %v630 = vpop.permute.xlu0 %629
        %632 = vset.pattern.permute.xlu0 1
        %633 = vperm.xlu0 %632, %v478
        %v634 = vpop.permute.xlu0 %633
        %636 = vset.pattern.permute.xlu0 1
        %637 = vperm.xlu0 %636, %v479
        %v638 = vpop.permute.xlu0 %637
        %640 = vset.pattern.permute.xlu0 1
        %641 = vperm.xlu0 %640, %v480
        %v642 = vpop.permute.xlu0 %641
        %644 = vset.pattern.permute.xlu0 1
        %645 = vperm.xlu0 %644, %v481
        %v646 = vpop.permute.xlu0 %645
        %648 = vset.pattern.permute.xlu0 1
        %649 = vperm.xlu0 %648, %v482
        %v650 = vpop.permute.xlu0 %649
        %652 = vset.pattern.permute.xlu0 1
        %653 = vperm.xlu0 %652, %v483
        %v654 = vpop.permute.xlu0 %653
        %656 = vset.pattern.permute.xlu0 1
        %657 = vperm.xlu0 %656, %v484
        %v658 = vpop.permute.xlu0 %657
        %660 = vset.pattern.permute.xlu0 1
        %661 = vperm.xlu0 %660, %v485
        %v662 = vpop.permute.xlu0 %661
        %664 = vset.pattern.permute.xlu0 1
        %665 = vperm.xlu0 %664, %v486
        %v666 = vpop.permute.xlu0 %665
        %v668 = vlaneseq
        %v669 = vshrl.u32 %v668, 7
        %v670 = vsub.s32 1, %v669
        %v671 = vrot.slane %v470, %v670
        %v672 = vsub.f32 %v606, %v671
        %v673 = vsub.f32 %v610, %v671
        %v674 = vsub.f32 %v614, %v671
        %v675 = vsub.f32 %v618, %v671
        %v676 = vsub.f32 %v622, %v671
        %v677 = vsub.f32 %v626, %v671
        %v678 = vsub.f32 %v630, %v671
        %v679 = vsub.f32 %v634, %v671
        %v680 = vsub.f32 %v638, %v671
        %v681 = vsub.f32 %v642, %v671
        %v682 = vsub.f32 %v646, %v671
        %v683 = vsub.f32 %v650, %v671
        %v684 = vsub.f32 %v654, %v671
        %v685 = vsub.f32 %v658, %v671
        %v686 = vsub.f32 %v662, %v671
        %v687 = vsub.f32 %v666, %v671
        %v688 = vmul.f32 %v672, %v672
        %v689 = vmul.f32 %v673, %v673
        %v690 = vmul.f32 %v674, %v674
        %v691 = vmul.f32 %v675, %v675
        %v692 = vmul.f32 %v676, %v676
        %v693 = vmul.f32 %v677, %v677
        %v694 = vmul.f32 %v678, %v678
        %v695 = vmul.f32 %v679, %v679
        %v696 = vmul.f32 %v680, %v680
        %v697 = vmul.f32 %v681, %v681
        %v698 = vmul.f32 %v682, %v682
        %v699 = vmul.f32 %v683, %v683
        %v700 = vmul.f32 %v684, %v684
        %v701 = vmul.f32 %v685, %v685
        %v702 = vmul.f32 %v686, %v686
        %v703 = vmul.f32 %v687, %v687
        %v704 = vadd.f32 %v588, %v688
        %v705 = vadd.f32 %v589, %v689
        %v706 = vadd.f32 %v590, %v690
        %v707 = vadd.f32 %v591, %v691
        %v708 = vadd.f32 %v592, %v692
        %v709 = vadd.f32 %v593, %v693
        %v710 = vadd.f32 %v594, %v694
        %v711 = vadd.f32 %v595, %v695
        %v712 = vadd.f32 %v596, %v696
        %v713 = vadd.f32 %v597, %v697
        %v714 = vadd.f32 %v598, %v698
        %v715 = vadd.f32 %v599, %v699
        %v716 = vadd.f32 %v600, %v700
        %v717 = vadd.f32 %v601, %v701
        %v718 = vadd.f32 %v602, %v702
        %v719 = vadd.f32 %v603, %v703
        %720 = vset.pattern.permute.xlu0 2
        %721 = vperm.xlu0 %720, %v471
        %v722 = vpop.permute.xlu0 %721
        %724 = vset.pattern.permute.xlu0 2
        %725 = vperm.xlu0 %724, %v472
        %v726 = vpop.permute.xlu0 %725
        %728 = vset.pattern.permute.xlu0 2
        %729 = vperm.xlu0 %728, %v473
        %v730 = vpop.permute.xlu0 %729
        %732 = vset.pattern.permute.xlu0 2
        %733 = vperm.xlu0 %732, %v474
        %v734 = vpop.permute.xlu0 %733
        %736 = vset.pattern.permute.xlu0 2
        %737 = vperm.xlu0 %736, %v475
        %v738 = vpop.permute.xlu0 %737
        %740 = vset.pattern.permute.xlu0 2
        %741 = vperm.xlu0 %740, %v476
        %v742 = vpop.permute.xlu0 %741
        %744 = vset.pattern.permute.xlu0 2
        %745 = vperm.xlu0 %744, %v477
        %v746 = vpop.permute.xlu0 %745
        %748 = vset.pattern.permute.xlu0 2
        %749 = vperm.xlu0 %748, %v478
        %v750 = vpop.permute.xlu0 %749
        %752 = vset.pattern.permute.xlu0 2
        %753 = vperm.xlu0 %752, %v479
        %v754 = vpop.permute.xlu0 %753
        %756 = vset.pattern.permute.xlu0 2
        %757 = vperm.xlu0 %756, %v480
        %v758 = vpop.permute.xlu0 %757
        %760 = vset.pattern.permute.xlu0 2
        %761 = vperm.xlu0 %760, %v481
        %v762 = vpop.permute.xlu0 %761
        %764 = vset.pattern.permute.xlu0 2
        %765 = vperm.xlu0 %764, %v482
        %v766 = vpop.permute.xlu0 %765
        %768 = vset.pattern.permute.xlu0 2
        %769 = vperm.xlu0 %768, %v483
        %v770 = vpop.permute.xlu0 %769
        %772 = vset.pattern.permute.xlu0 2
        %773 = vperm.xlu0 %772, %v484
        %v774 = vpop.permute.xlu0 %773
        %776 = vset.pattern.permute.xlu0 2
        %777 = vperm.xlu0 %776, %v485
        %v778 = vpop.permute.xlu0 %777
        %780 = vset.pattern.permute.xlu0 2
        %781 = vperm.xlu0 %780, %v486
        %v782 = vpop.permute.xlu0 %781
        %v784 = vlaneseq
        %v785 = vshrl.u32 %v784, 7
        %v786 = vsub.s32 2, %v785
        %v787 = vrot.slane %v470, %v786
        %v788 = vsub.f32 %v722, %v787
        %v789 = vsub.f32 %v726, %v787
        %v790 = vsub.f32 %v730, %v787
        %v791 = vsub.f32 %v734, %v787
        %v792 = vsub.f32 %v738, %v787
        %v793 = vsub.f32 %v742, %v787
        %v794 = vsub.f32 %v746, %v787
        %v795 = vsub.f32 %v750, %v787
        %v796 = vsub.f32 %v754, %v787
        %v797 = vsub.f32 %v758, %v787
        %v798 = vsub.f32 %v762, %v787
        %v799 = vsub.f32 %v766, %v787
        %v800 = vsub.f32 %v770, %v787
        %v801 = vsub.f32 %v774, %v787
        %v802 = vsub.f32 %v778, %v787
        %v803 = vsub.f32 %v782, %v787
        %v804 = vmul.f32 %v788, %v788
        %v805 = vmul.f32 %v789, %v789
        %v806 = vmul.f32 %v790, %v790
        %v807 = vmul.f32 %v791, %v791
        %v808 = vmul.f32 %v792, %v792
        %v809 = vmul.f32 %v793, %v793
        %v810 = vmul.f32 %v794, %v794
        %v811 = vmul.f32 %v795, %v795
        %v812 = vmul.f32 %v796, %v796
        %v813 = vmul.f32 %v797, %v797
        %v814 = vmul.f32 %v798, %v798
        %v815 = vmul.f32 %v799, %v799
        %v816 = vmul.f32 %v800, %v800
        %v817 = vmul.f32 %v801, %v801
        %v818 = vmul.f32 %v802, %v802
        %v819 = vmul.f32 %v803, %v803
        %v820 = vadd.f32 %v704, %v804
        %v821 = vadd.f32 %v705, %v805
        %v822 = vadd.f32 %v706, %v806
        %v823 = vadd.f32 %v707, %v807
        %v824 = vadd.f32 %v708, %v808
        %v825 = vadd.f32 %v709, %v809
        %v826 = vadd.f32 %v710, %v810
        %v827 = vadd.f32 %v711, %v811
        %v828 = vadd.f32 %v712, %v812
        %v829 = vadd.f32 %v713, %v813
        %v830 = vadd.f32 %v714, %v814
        %v831 = vadd.f32 %v715, %v815
        %v832 = vadd.f32 %v716, %v816
        %v833 = vadd.f32 %v717, %v817
        %v834 = vadd.f32 %v718, %v818
        %v835 = vadd.f32 %v719, %v819
        %v836 = vmax.f32 %v820, 1e-10
        %v837 = vmax.f32 %v821, 1e-10
        %v838 = vmax.f32 %v822, 1e-10
        %v839 = vmax.f32 %v823, 1e-10
        %v840 = vmax.f32 %v824, 1e-10
        %v841 = vmax.f32 %v825, 1e-10
        %v842 = vmax.f32 %v826, 1e-10
        %v843 = vmax.f32 %v827, 1e-10
        %v844 = vmax.f32 %v828, 1e-10
        %v845 = vmax.f32 %v829, 1e-10
        %v846 = vmax.f32 %v830, 1e-10
        %v847 = vmax.f32 %v831, 1e-10
        %v848 = vmax.f32 %v832, 1e-10
        %v849 = vmax.f32 %v833, 1e-10
        %v850 = vmax.f32 %v834, 1e-10
        %v851 = vmax.f32 %v835, 1e-10
        %v852 = vrsqrt.pop %v836
        %v853 = vmul.f32 %v836, %v852
        %vm854 = vcmp.eq.f32.partialorder %v836, inf
        %v855 = vsel %vm854, %v836, %v853
        %vm856 = vcmp.eq.f32.partialorder %v836, 0.0
        %v857 = vand.u32 %v836, 2147483648
        %v858 = vsel %vm856, %v857, %v855
        %v859 = vrsqrt.pop %v837
        %v860 = vmul.f32 %v837, %v859
        %vm861 = vcmp.eq.f32.partialorder %v837, inf
        %v862 = vsel %vm861, %v837, %v860
        %vm863 = vcmp.eq.f32.partialorder %v837, 0.0
        %v864 = vand.u32 %v837, 2147483648
        %v865 = vsel %vm863, %v864, %v862
        %v866 = vrsqrt.pop %v838
        %v867 = vmul.f32 %v838, %v866
        %vm868 = vcmp.eq.f32.partialorder %v838, inf
        %v869 = vsel %vm868, %v838, %v867
        %vm870 = vcmp.eq.f32.partialorder %v838, 0.0
        %v871 = vand.u32 %v838, 2147483648
        %v872 = vsel %vm870, %v871, %v869
        %v873 = vrsqrt.pop %v839
        %v874 = vmul.f32 %v839, %v873
        %vm875 = vcmp.eq.f32.partialorder %v839, inf
        %v876 = vsel %vm875, %v839, %v874
        %vm877 = vcmp.eq.f32.partialorder %v839, 0.0
        %v878 = vand.u32 %v839, 2147483648
        %v879 = vsel %vm877, %v878, %v876
        %v880 = vrsqrt.pop %v840
        %v881 = vmul.f32 %v840, %v880
        %vm882 = vcmp.eq.f32.partialorder %v840, inf
        %v883 = vsel %vm882, %v840, %v881
        %vm884 = vcmp.eq.f32.partialorder %v840, 0.0
        %v885 = vand.u32 %v840, 2147483648
        %v886 = vsel %vm884, %v885, %v883
        %v887 = vrsqrt.pop %v841
        %v888 = vmul.f32 %v841, %v887
        %vm889 = vcmp.eq.f32.partialorder %v841, inf
        %v890 = vsel %vm889, %v841, %v888
        %vm891 = vcmp.eq.f32.partialorder %v841, 0.0
        %v892 = vand.u32 %v841, 2147483648
        %v893 = vsel %vm891, %v892, %v890
        %v894 = vrsqrt.pop %v842
        %v895 = vmul.f32 %v842, %v894
        %vm896 = vcmp.eq.f32.partialorder %v842, inf
        %v897 = vsel %vm896, %v842, %v895
        %vm898 = vcmp.eq.f32.partialorder %v842, 0.0
        %v899 = vand.u32 %v842, 2147483648
        %v900 = vsel %vm898, %v899, %v897
        %v901 = vrsqrt.pop %v843
        %v902 = vmul.f32 %v843, %v901
        %vm903 = vcmp.eq.f32.partialorder %v843, inf
        %v904 = vsel %vm903, %v843, %v902
        %vm905 = vcmp.eq.f32.partialorder %v843, 0.0
        %v906 = vand.u32 %v843, 2147483648
        %v907 = vsel %vm905, %v906, %v904
        %v908 = vrsqrt.pop %v844
        %v909 = vmul.f32 %v844, %v908
        %vm910 = vcmp.eq.f32.partialorder %v844, inf
        %v911 = vsel %vm910, %v844, %v909
        %vm912 = vcmp.eq.f32.partialorder %v844, 0.0
        %v913 = vand.u32 %v844, 2147483648
        %v914 = vsel %vm912, %v913, %v911
        %v915 = vrsqrt.pop %v845
        %v916 = vmul.f32 %v845, %v915
        %vm917 = vcmp.eq.f32.partialorder %v845, inf
        %v918 = vsel %vm917, %v845, %v916
        %vm919 = vcmp.eq.f32.partialorder %v845, 0.0
        %v920 = vand.u32 %v845, 2147483648
        %v921 = vsel %vm919, %v920, %v918
        %v922 = vrsqrt.pop %v846
        %v923 = vmul.f32 %v846, %v922
        %vm924 = vcmp.eq.f32.partialorder %v846, inf
        %v925 = vsel %vm924, %v846, %v923
        %vm926 = vcmp.eq.f32.partialorder %v846, 0.0
        %v927 = vand.u32 %v846, 2147483648
        %v928 = vsel %vm926, %v927, %v925
        %v929 = vrsqrt.pop %v847
        %v930 = vmul.f32 %v847, %v929
        %vm931 = vcmp.eq.f32.partialorder %v847, inf
        %v932 = vsel %vm931, %v847, %v930
        %vm933 = vcmp.eq.f32.partialorder %v847, 0.0
        %v934 = vand.u32 %v847, 2147483648
        %v935 = vsel %vm933, %v934, %v932
        %v936 = vrsqrt.pop %v848
        %v937 = vmul.f32 %v848, %v936
        %vm938 = vcmp.eq.f32.partialorder %v848, inf
        %v939 = vsel %vm938, %v848, %v937
        %vm940 = vcmp.eq.f32.partialorder %v848, 0.0
        %v941 = vand.u32 %v848, 2147483648
        %v942 = vsel %vm940, %v941, %v939
        %v943 = vrsqrt.pop %v849
        %v944 = vmul.f32 %v849, %v943
        %vm945 = vcmp.eq.f32.partialorder %v849, inf
        %v946 = vsel %vm945, %v849, %v944
        %vm947 = vcmp.eq.f32.partialorder %v849, 0.0
        %v948 = vand.u32 %v849, 2147483648
        %v949 = vsel %vm947, %v948, %v946
        %v950 = vrsqrt.pop %v850
        %v951 = vmul.f32 %v850, %v950
        %vm952 = vcmp.eq.f32.partialorder %v850, inf
        %v953 = vsel %vm952, %v850, %v951
        %vm954 = vcmp.eq.f32.partialorder %v850, 0.0
        %v955 = vand.u32 %v850, 2147483648
        %v956 = vsel %vm954, %v955, %v953
        %v957 = vrsqrt.pop %v851
        %v958 = vmul.f32 %v851, %v957
        %vm959 = vcmp.eq.f32.partialorder %v851, inf
        %v960 = vsel %vm959, %v851, %v958
        %vm961 = vcmp.eq.f32.partialorder %v851, 0.0
        %v962 = vand.u32 %v851, 2147483648
        %v963 = vsel %vm961, %v962, %v960
        %v964 = vmul.f32 %v858, %v836
        %v965 = vmul.f32 %v865, %v837
        %v966 = vmul.f32 %v872, %v838
        %v967 = vmul.f32 %v879, %v839
        %v968 = vmul.f32 %v886, %v840
        %v969 = vmul.f32 %v893, %v841
        %v970 = vmul.f32 %v900, %v842
        %v971 = vmul.f32 %v907, %v843
        %v972 = vmul.f32 %v914, %v844
        %v973 = vmul.f32 %v921, %v845
        %v974 = vmul.f32 %v928, %v846
        %v975 = vmul.f32 %v935, %v847
        %v976 = vmul.f32 %v942, %v848
        %v977 = vmul.f32 %v949, %v849
        %v978 = vmul.f32 %v956, %v850
        %v979 = vmul.f32 %v963, %v851
        %v980 = vld [vmem:[#allocation2] sm:$0xf]
        %981 = vmatprep.subr.mxu0 0.0
        %982 = vmatpush1.msra.mxu0 %v979
        %983 = vmatprep.subr.mxu0 0.0
        %984 = vmatpush1.msra.mxu0 %v978
        %985 = vmatprep.subr.mxu0 0.0
        %986 = vmatpush1.msra.mxu0 %v977
        %987 = vmatprep.subr.mxu0 0.0
        %988 = vmatpush1.msra.mxu0 %v976
        %989 = vmatprep.subr.mxu0 0.0
        %990 = vmatpush1.msra.mxu0 %v975
        %991 = vmatprep.subr.mxu0 0.0
        %992 = vmatpush1.msra.mxu0 %v974
        %993 = vmatprep.subr.mxu0 0.0
        %994 = vmatpush1.msra.mxu0 %v973
        %995 = vmatprep.subr.mxu0 0.0
        %996 = vmatpush1.msra.mxu0 %v972
        %997 = vmatprep.subr.mxu0 0.0
        %998 = vmatpush1.msra.mxu0 %v971
        %999 = vmatprep.subr.mxu0 0.0
        %1000 = vmatpush1.msra.mxu0 %v970
        %1001 = vmatprep.subr.mxu0 0.0
        %1002 = vmatpush1.msra.mxu0 %v969
        %1003 = vmatprep.subr.mxu0 0.0
        %1004 = vmatpush1.msra.mxu0 %v968
        %1005 = vmatprep.subr.mxu0 0.0
        %1006 = vmatpush1.msra.mxu0 %v967
        %1007 = vmatprep.subr.mxu0 0.0
        %1008 = vmatpush1.msra.mxu0 %v966
        %1009 = vmatprep.subr.mxu0 0.0
        %1010 = vmatpush1.msra.mxu0 %v965
        %1011 = vmatprep.subr.mxu0 0.0
        %1012 = vmatpush1.msra.mxu0 %v964
        %1013 = vmatprep.subr.mxu0 0.0
        %1014 = vmatpush2.msra.mxu0 0.0
        %1015 = vmatprep.subr.mxu0 0.0
        %1016 = vmatpush2.msra.mxu0 0.0
        %1017 = vmatprep.subr.mxu0 0.0
        %1018 = vmatpush2.msra.mxu0 0.0
        %1019 = vmatprep.subr.mxu0 0.0
        %1020 = vmatpush2.msra.mxu0 0.0
        %1021 = vmatprep.subr.mxu0 0.0
        %1022 = vmatpush2.msra.mxu0 0.0
        %1023 = vmatprep.subr.mxu0 0.0
        %1024 = vmatpush2.msra.mxu0 0.0
        %1025 = vmatprep.subr.mxu0 0.0
        %1026 = vmatpush2.msra.mxu0 0.0
        %1027 = vmatprep.subr.mxu0 0.0
        %1028 = vmatpush2.msra.mxu0 0.0
        %1029 = vmatprep.subr.mxu0 0.0
        %1030 = vmatpush2.msra.mxu0 0.0
        %1031 = vmatprep.subr.mxu0 0.0
        %1032 = vmatpush2.msra.mxu0 0.0
        %1033 = vmatprep.subr.mxu0 0.0
        %1034 = vmatpush2.msra.mxu0 0.0
        %1035 = vmatprep.subr.mxu0 0.0
        %1036 = vmatpush2.msra.mxu0 0.0
        %1037 = vmatprep.subr.mxu0 0.0
        %1038 = vmatpush2.msra.mxu0 0.0
        %1039 = vmatprep.subr.mxu0 0.0
        %1040 = vmatpush2.msra.mxu0 0.0
        %1041 = vmatprep.subr.mxu0 0.0
        %1042 = vmatpush2.msra.mxu0 0.0
        %1043 = vmatprep.subr.mxu0 0.0
        %1044 = vmatpush2.msra.mxu0 0.0
        %1045 = vmatprep.mubr.f32.mxu0 0.0
        %1046 = vmatmul.mubr.f32.gmra.mxu0 %v487
        %v1047 = vpop.f32.mrf.mxu0
        %v1048 = vadd.f32 0.0, %v1047
        %v1049 = vpop.f32.mrf.mxu0
        %1050 = vdwg.mxu0
        %v1051 = vadd.f32 %v980, %v1048
        %1052 = vst [vmem:[#allocation2] sm:$0xf] %v1051
        // Predicated region
        $region53: #{tpu_custom_call.1} parent=47 // pred_check
          %p1053 = pneg %p465
        $region54: #{tpu_custom_call.1} parent=47 // pred_check_branch
          %1055 = sbr.rel (%p1053) target = $region56
        $region55: #{tpu_custom_call.1} parent=47 // pred_region
          %v1056 = vld [vmem:[%s444] sm:$0xf]
          %v1057 = vld [vmem:[%s448] sm:$0xf]
          %1059 = vset.pattern.permute.xlu0 0
          %1060 = vperm.xlu0 %1059, %v1056
          %v1061 = vpop.permute.xlu0 %1060
          %v1063 = vmul.f32 %v1061, %v571
          %1065 = vset.pattern.permute.xlu0 0
          %1066 = vperm.xlu0 %1065, %v1057
          %v1067 = vpop.permute.xlu0 %1066
          %v1069 = vadd.f32 %v1067, %v1063
          %1070 = vset.pattern.permute.xlu0 1
          %1071 = vperm.xlu0 %1070, %v1056
          %v1072 = vpop.permute.xlu0 %1071
          %v1074 = vmul.f32 %v1072, %v671
          %v1075 = vadd.f32 %v1069, %v1074
          %1076 = vset.pattern.permute.xlu0 2
          %1077 = vperm.xlu0 %1076, %v1056
          %v1078 = vpop.permute.xlu0 %1077
          %v1080 = vmul.f32 %v1078, %v787
          %v1081 = vadd.f32 %v1075, %v1080
          %v1082 = vld [vmem:[#allocation2] sm:$0xf]
          %v1083 = vadd.f32 %v1082, %v1081
          %1084 = vst [vmem:[%s416] sm:$0xf] %v1083
        $region56: #{tpu_custom_call.1} parent=47 // pred_fallthru
          _
        %s1085 = sand.u32 %s242, 1
        %s1086 = scalar_lea.sflag [#allocation4], %s1085
        %s1087 = sand.u32 %s242, 1
        %s1088 = smul.addr %s1087, 4
        %s1089 = scalar_lea.vmem [#allocation3], %s1088
        // Predicated region
        $region57: #{tpu_custom_call.1} parent=47 // pred_check
          %p1090 = pneg %p252
        $region58: #{tpu_custom_call.1} parent=47 // pred_check_branch
          %1092 = sbr.rel (%p1090) target = $region60
        $region59: #{tpu_custom_call.1} parent=47 // pred_region
          %s1094 = ssub.s32 64, 64
          %1095 = vsyncadd %s1086, %s1094
          %s1096 = sadd.s32 %s27, %s26
          %s1097 = smul.addr %s1096, 64
          %s1098 = scalar_lea.hbm %s7, %s1097
          %s1100 = sshll.u32 %s1089, 4
          %s1101 = int_to_ptr.vmem [resolvable:$true] %s1100
          %1103 = dma.vmem_to_hbm [thread:$0]  %s1101, 64, %s1098, %s1086
        $region60: #{tpu_custom_call.1} parent=47 // pred_fallthru
          _
      $region48: #{tpu_custom_call.1} parent=5 // pred_fallthru
        _
      %p1104 = scmp.le.s32.totalorder 2, %s16
      // Predicated region
      $region61: #{tpu_custom_call.1} parent=5 // pred_check
        %p1105 = pneg %p1104
      $region62: #{tpu_custom_call.1} parent=5 // pred_check_branch
        %1107 = sbr.rel (%p1105) target = $region64
      $region63: #{tpu_custom_call.1} parent=5 // pred_region
        %s1108 = ssub.s32 %s16, 2
        // Predicated region
        $region65: #{tpu_custom_call.1} parent=63 // pred_check
          %p1109 = pneg %p258
        $region66: #{tpu_custom_call.1} parent=63 // pred_check_branch
          %1111 = sbr.rel (%p1109) target = $region68
        $region67: #{tpu_custom_call.1} parent=63 // pred_region
          %s1112 = sand.u32 %s243, 1
          %s1113 = scalar_lea.sflag [#allocation4], %s1112
          %s1114 = sand.u32 %s243, 1
          %s1115 = smul.addr %s1114, 4
          %s1116 = scalar_lea.vmem [#allocation3], %s1115
          %1117 = dma.done %s1113, 64
        $region68: #{tpu_custom_call.1} parent=63 // pred_fallthru
          _
      $region64: #{tpu_custom_call.1} parent=5 // pred_fallthru
        _
    $region6: #{tpu_custom_call.1} parent=1 // loop_footer
      %s20 = sadd.s32 1, %s16
    $region7: #{tpu_custom_call.1} parent=1 // loop_footer_branch
      %15 = sbr.rel target = $region3
    $region8: #{tpu_custom_call.1} parent=1 // loop_exit
      _
    %1118 = vsyncpa [#allocation4], 1
    %s1119 = scalar_lea.sflag [#allocation4], 1
    %1120 = vsyncpa %s1119, 1

</llo_original>
